<compile_context>
chip_gen: v6e
topology: v6e:2x2x1
jax: 0.10.0
libtpu: 0.0.40
codegen_flags: <defaults>
</compile_context>

<pallas_src>
import functools

import jax
import jax.numpy as jnp
from jax.experimental import pallas as pl
from jax.experimental.pallas import tpu as pltpu

LANE = 128          # lane width (last-dim tiling unit)
BF16_SUBLANE = 16   # bf16 packs 16 rows per sublane group


def _round_up(n, m):
    return ((n + m - 1) // m) * m


def _mlp_kernel(num_linear, x_ref, w_ref, b_ref, out_ref):
    """Fused MLP forward on one batch tile.

    x_ref:   [tm, dmax]            bf16 activation tile
    w_ref:   [L, dmax, dmax]       bf16 stacked (zero-padded) weights, resident
    b_ref:   [L, dmax]             f32  stacked (zero-padded) biases, resident
    out_ref: [tm, dmax]            f32  output tile
    """
    h = x_ref[...]  # bf16
    for i in range(num_linear):                      # static unroll
        w = w_ref[i]                                 # [dmax, dmax] bf16
        b = b_ref[pl.ds(i, 1), :]                    # [1, dmax] f32
        acc = jnp.dot(h, w, preferred_element_type=jnp.float32) + b  # f32 acc
        if i < num_linear - 1:
            acc = jnp.maximum(acc, 0.0)              # ReLU in f32 (v5e-safe)
            h = acc.astype(jnp.bfloat16)             # back to bf16 for next MXU op
        else:
            out_ref[...] = acc.astype(out_ref.dtype)


def mlp_forward(x, weights, biases, *, tm=256):
    """TrainModel.forward(x) as a single Pallas TPU kernel.

    x:       [batch, input_dim] float32
    weights: list of [in_i, out_i] float32 (transposed vs. PyTorch nn.Linear)
    biases:  list of [1, out_i] (or [out_i]) float32
    Returns: [batch, output_dim] float32
    """
    num_linear = len(weights)
    batch, input_dim = x.shape
    out_dim = weights[-1].shape[1]

    # Lane-dense padded feature width shared by every layer.
    dims = [input_dim] + [w.shape[1] for w in weights]
    dmax = max(_round_up(d, LANE) for d in dims)

    # Batch tile: multiple of 16 (bf16 sublane packing), capped at tm.
    tm_eff = min(_round_up(tm, BF16_SUBLANE), _round_up(batch, BF16_SUBLANE))
    batch_p = _round_up(batch, tm_eff)
    n_tiles = batch_p // tm_eff

    # Zero-padded, stacked operands.  Zero padding is exact: padded input
    # columns are 0, padded weight rows/cols are 0, padded biases are 0, and
    # ReLU(0) = 0, so padded lanes never contribute to the real outputs.
    w_stack = jnp.stack([
        jnp.pad(w.astype(jnp.bfloat16),
                ((0, dmax - w.shape[0]), (0, dmax - w.shape[1])))
        for w in weights
    ])                                                     # [L, dmax, dmax] bf16
    b_stack = jnp.stack([
        jnp.pad(jnp.reshape(b, (-1,)).astype(jnp.float32), (0, dmax - b.shape[-1]))
        for b in biases
    ])                                                     # [L, dmax] f32
    x_p = jnp.pad(x.astype(jnp.bfloat16),
                  ((0, batch_p - batch), (0, dmax - input_dim)))  # [batch_p, dmax]

    in_specs = [
        pl.BlockSpec((tm_eff, dmax), lambda i: (i, 0)),                 # x tile
        pl.BlockSpec((num_linear, dmax, dmax), lambda i: (0, 0, 0)),    # weights (resident)
        pl.BlockSpec((num_linear, dmax), lambda i: (0, 0)),             # biases (resident)
    ]
    out_spec = pl.BlockSpec((tm_eff, dmax), lambda i: (i, 0))

    flops = 2 * batch_p * num_linear * dmax * dmax
    bytes_accessed = (x_p.size * 2 + w_stack.size * 2 + b_stack.size * 4
                      + batch_p * dmax * 4)
    cost = pl.CostEstimate(flops=flops, transcendentals=0,
                           bytes_accessed=bytes_accessed)

    kernel = functools.partial(_mlp_kernel, num_linear)
    out_p = pl.pallas_call(
        kernel,
        out_shape=jax.ShapeDtypeStruct((batch_p, dmax), jnp.float32),
        grid=(n_tiles,),
        in_specs=in_specs,
        out_specs=out_spec,
        compiler_params=pltpu.CompilerParams(
            dimension_semantics=("parallel",),
        ),
        cost_estimate=cost,
    )(x_p, w_stack, b_stack)

    return out_p[:batch, :out_dim]


def init_train_model_params(key, num_layers, width, input_dim, output_dim):
    """Deterministic init matching TrainModel's layer shapes.

    PyTorch nn.Linear default init: U(-1/sqrt(fan_in), 1/sqrt(fan_in)) for both
    weight and bias. Weights are stored transposed ([in, out]) for the kernel.
    """
    dims = [input_dim] + [width] * (num_layers + 1) + [output_dim]
    weights, biases = [], []
    for i in range(len(dims) - 1):
        fan_in, fan_out = dims[i], dims[i + 1]
        key, wk, bk = jax.random.split(key, 3)
        bound = 1.0 / jnp.sqrt(jnp.float32(fan_in))
        w = jax.random.uniform(wk, (fan_in, fan_out), jnp.float32, -bound, bound)
        b = jax.random.uniform(bk, (1, fan_out), jnp.float32, -bound, bound)
        weights.append(w)
        biases.append(b)
    return weights, biases


def mlp_forward_ref_bf16(x, weights, biases):
    """Pure-JAX reference that mirrors the kernel's bf16-operand / f32-acc math."""
    h = x.astype(jnp.bfloat16)
    n = len(weights)
    for i, (w, b) in enumerate(zip(weights, biases)):
        acc = jnp.dot(h, w.astype(jnp.bfloat16),
                      preferred_element_type=jnp.float32) + b.astype(jnp.float32)
        if i < n - 1:
            acc = jnp.maximum(acc, 0.0)
            h = acc.astype(jnp.bfloat16)
        else:
            return acc
    return h


def mlp_forward_ref_f32(x, weights, biases):
    """Pure-f32 reference (matches the PyTorch module's math)."""
    h = x
    n = len(weights)
    for i, (w, b) in enumerate(zip(weights, biases)):
        h = h @ w + b
        if i < n - 1:
            h = jnp.maximum(h, 0.0)
    return h


if __name__ == "__main__":
    # TrainModel(num_layers=2, width=32, batch_size=8, lr=..., input_dim=16, output_dim=8)
    num_layers, width, batch, input_dim, output_dim = 2, 32, 8, 16, 8

    key = jax.random.PRNGKey(0)
    key, xk = jax.random.split(key)
    x = jax.random.normal(xk, (batch, input_dim), jnp.float32)

    weights, biases = init_train_model_params(
        key, num_layers, width, input_dim, output_dim
    )

    out = mlp_forward(x, weights, biases)
    out = jax.block_until_ready(out)
    assert out.shape == (batch, output_dim)

    # Tight check against a reference mirroring the kernel's bf16/f32 math.
    ref_bf16 = mlp_forward_ref_bf16(x, weights, biases)
    assert jnp.allclose(out, ref_bf16, atol=1e-3, rtol=1e-3), "mismatch vs bf16 reference"

    # Coarse check against the pure-f32 reference (bf16 operand quantization).
    ref_f32 = mlp_forward_ref_f32(x, weights, biases)
    assert jnp.allclose(out, ref_f32, atol=3e-2, rtol=3e-2), "mismatch vs f32 reference"

    # NOTE: only the forward pass (self.model(x)) is implemented as a kernel.
    # TODO(synk): train_batch (MSE loss + backward + Adam update) is optimizer-side
    # logic; fusing it into one pallas_call (weights via input_output_aliases)
    # is the next step for amortizing launch overhead but is not implemented here.
    print("KERNEL_OK")
</pallas_src>

<mosaic_0001>
module attributes {stable_mosaic.version = 11 : i64} {
  func.func @_mlp_kernel(%arg0: i32, %arg1: memref<16x128xbf16, #tpu.memory_space<vmem>>, %arg2: memref<4x128x128xbf16, #tpu.memory_space<vmem>>, %arg3: memref<4x128xf32, #tpu.memory_space<vmem>>, %arg4: memref<16x128xf32, #tpu.memory_space<vmem>>) attributes {dimension_semantics = [#tpu.dimension_semantics<parallel>], iteration_bounds = array<i64: 1>, scalar_prefetch = 0 : i64, scratch_operands = 0 : i64, tpu.core_type = #tpu.core_type<tc>, window_params = [{transform_indices = @transform_0, window_bounds = array<i64: 16, 128>}, {pipeline_mode = #tpu.pipeline_mode<synchronous>, transform_indices = @transform_1, window_bounds = array<i64: 4, 128, 128>}, {pipeline_mode = #tpu.pipeline_mode<synchronous>, transform_indices = @transform_2, window_bounds = array<i64: 4, 128>}, {transform_indices = @transform_3, window_bounds = array<i64: 16, 128>}]} {
    %c0 = arith.constant 0 : index
    %c0_0 = arith.constant 0 : index
    %0 = vector.load %arg1[%c0, %c0_0] : memref<16x128xbf16, #tpu.memory_space<vmem>>, vector<16x128xbf16>
    %c0_1 = arith.constant 0 : index
    %c0_2 = arith.constant 0 : index
    %c0_3 = arith.constant 0 : index
    %1 = vector.load %arg2[%c0_1, %c0_2, %c0_3] : memref<4x128x128xbf16, #tpu.memory_space<vmem>>, vector<1x128x128xbf16>
    %2 = vector.shape_cast %1 : vector<1x128x128xbf16> to vector<128x128xbf16>
    %c0_4 = arith.constant 0 : index
    %c0_5 = arith.constant 0 : index
    %3 = vector.load %arg3[%c0_4, %c0_5] : memref<4x128xf32, #tpu.memory_space<vmem>>, vector<1x128xf32>
    %cst = arith.constant dense<0.000000e+00> : vector<16x128xf32>
    %4 = tpu.matmul %0, %2, %cst {dimension_numbers = #tpu.dot_dimension_numbers<[1], [0], [0], [1], [0, 0, 1, 1], [], []>} : vector<16x128xbf16>, vector<128x128xbf16>, vector<16x128xf32> -> vector<16x128xf32>
    %5 = vector.broadcast %3 : vector<1x128xf32> to vector<16x128xf32>
    %6 = arith.addf %4, %5 : vector<16x128xf32>
    %cst_6 = arith.constant 0.000000e+00 : f32
    %7 = vector.broadcast %cst_6 : f32 to vector<16x128xf32>
    %8 = arith.maximumf %6, %7 : vector<16x128xf32>
    %9 = arith.truncf %8 : vector<16x128xf32> to vector<16x128xbf16>
    %c1 = arith.constant 1 : index
    %c0_7 = arith.constant 0 : index
    %c0_8 = arith.constant 0 : index
    %10 = vector.load %arg2[%c1, %c0_7, %c0_8] : memref<4x128x128xbf16, #tpu.memory_space<vmem>>, vector<1x128x128xbf16>
    %11 = vector.shape_cast %10 : vector<1x128x128xbf16> to vector<128x128xbf16>
    %c1_9 = arith.constant 1 : index
    %c0_10 = arith.constant 0 : index
    %12 = vector.load %arg3[%c1_9, %c0_10] : memref<4x128xf32, #tpu.memory_space<vmem>>, vector<1x128xf32>
    %cst_11 = arith.constant dense<0.000000e+00> : vector<16x128xf32>
    %13 = tpu.matmul %9, %11, %cst_11 {dimension_numbers = #tpu.dot_dimension_numbers<[1], [0], [0], [1], [0, 0, 1, 1], [], []>} : vector<16x128xbf16>, vector<128x128xbf16>, vector<16x128xf32> -> vector<16x128xf32>
    %14 = vector.broadcast %12 : vector<1x128xf32> to vector<16x128xf32>
    %15 = arith.addf %13, %14 : vector<16x128xf32>
    %cst_12 = arith.constant 0.000000e+00 : f32
    %16 = vector.broadcast %cst_12 : f32 to vector<16x128xf32>
    %17 = arith.maximumf %15, %16 : vector<16x128xf32>
    %18 = arith.truncf %17 : vector<16x128xf32> to vector<16x128xbf16>
    %c2 = arith.constant 2 : index
    %c0_13 = arith.constant 0 : index
    %c0_14 = arith.constant 0 : index
    %19 = vector.load %arg2[%c2, %c0_13, %c0_14] : memref<4x128x128xbf16, #tpu.memory_space<vmem>>, vector<1x128x128xbf16>
    %20 = vector.shape_cast %19 : vector<1x128x128xbf16> to vector<128x128xbf16>
    %c2_15 = arith.constant 2 : index
    %c0_16 = arith.constant 0 : index
    %21 = vector.load %arg3[%c2_15, %c0_16] : memref<4x128xf32, #tpu.memory_space<vmem>>, vector<1x128xf32>
    %cst_17 = arith.constant dense<0.000000e+00> : vector<16x128xf32>
    %22 = tpu.matmul %18, %20, %cst_17 {dimension_numbers = #tpu.dot_dimension_numbers<[1], [0], [0], [1], [0, 0, 1, 1], [], []>} : vector<16x128xbf16>, vector<128x128xbf16>, vector<16x128xf32> -> vector<16x128xf32>
    %23 = vector.broadcast %21 : vector<1x128xf32> to vector<16x128xf32>
    %24 = arith.addf %22, %23 : vector<16x128xf32>
    %cst_18 = arith.constant 0.000000e+00 : f32
    %25 = vector.broadcast %cst_18 : f32 to vector<16x128xf32>
    %26 = arith.maximumf %24, %25 : vector<16x128xf32>
    %27 = arith.truncf %26 : vector<16x128xf32> to vector<16x128xbf16>
    %c3 = arith.constant 3 : index
    %c0_19 = arith.constant 0 : index
    %c0_20 = arith.constant 0 : index
    %28 = vector.load %arg2[%c3, %c0_19, %c0_20] : memref<4x128x128xbf16, #tpu.memory_space<vmem>>, vector<1x128x128xbf16>
    %29 = vector.shape_cast %28 : vector<1x128x128xbf16> to vector<128x128xbf16>
    %c3_21 = arith.constant 3 : index
    %c0_22 = arith.constant 0 : index
    %30 = vector.load %arg3[%c3_21, %c0_22] : memref<4x128xf32, #tpu.memory_space<vmem>>, vector<1x128xf32>
    %cst_23 = arith.constant dense<0.000000e+00> : vector<16x128xf32>
    %31 = tpu.matmul %27, %29, %cst_23 {dimension_numbers = #tpu.dot_dimension_numbers<[1], [0], [0], [1], [0, 0, 1, 1], [], []>} : vector<16x128xbf16>, vector<128x128xbf16>, vector<16x128xf32> -> vector<16x128xf32>
    %32 = vector.broadcast %30 : vector<1x128xf32> to vector<16x128xf32>
    %33 = arith.addf %31, %32 : vector<16x128xf32>
    %c0_24 = arith.constant 0 : index
    %c0_25 = arith.constant 0 : index
    %34 = vector.load %arg4[%c0_24, %c0_25] : memref<16x128xf32, #tpu.memory_space<vmem>>, vector<16x128xf32>
    tpu.vector_store %arg4[%c0_24, %c0_25], %33 {strides = array<i32>} : memref<16x128xf32, #tpu.memory_space<vmem>>, vector<16x128xf32>,
    return
  }
  func.func @transform_0(%arg0: i32) -> (i32, i32) {
    %c0_i32 = arith.constant 0 : i32
    %c0_i32_0 = arith.constant 0 : i32
    return %arg0, %c0_i32 : i32, i32
  }
  func.func @transform_1(%arg0: i32) -> (i32, i32, i32) {
    %c0_i32 = arith.constant 0 : i32
    %c0_i32_0 = arith.constant 0 : i32
    %c0_i32_1 = arith.constant 0 : i32
    %c0_i32_2 = arith.constant 0 : i32
    return %c0_i32, %c0_i32_0, %c0_i32_1 : i32, i32, i32
  }
  func.func @transform_2(%arg0: i32) -> (i32, i32) {
    %c0_i32 = arith.constant 0 : i32
    %c0_i32_0 = arith.constant 0 : i32
    %c0_i32_1 = arith.constant 0 : i32
    return %c0_i32, %c0_i32_0 : i32, i32
  }
  func.func @transform_3(%arg0: i32) -> (i32, i32) {
    %c0_i32 = arith.constant 0 : i32
    %c0_i32_0 = arith.constant 0 : i32
    return %arg0, %c0_i32 : i32, i32
  }
}

</mosaic_0001>

<llo_original>
// kernel: tpu_custom_call.1
$region0: #{tpu_custom_call.1}
  #allocation0 [shape = 'u32[]', space=smem, size = 0x4, offset = 0x4, fixed_abs, tag = 'smem constant byte address 0x4 - core index']
  #allocation1 [shape = 'u32[144,128]{1,0:T(1,128)}', space=vmem, size = 0x12000, scoped, tag = 'internal scratch']
  %s0 = inlined_call_operand.hbm [shape: bf16[16,128], index: 0, kind: input, shape index: {}]
  %s1 = inlined_call_operand.hbm [shape: bf16[4,128,128], index: 1, kind: input, shape index: {}]
  %s2 = inlined_call_operand.hbm [shape: f32[4,128], index: 2, kind: input, shape index: {}]
  %s3 = inlined_call_operand.hbm [shape: f32[16,128], index: 3, kind: output, shape index: {}]
  %s4 = sld [smem:[#allocation0]]
  $region34: #{tpu_custom_call.1} parent=0
    _
  %s6 = ssub.s32 1, %s4
  %s7 = scalar_select 0, %s6, %s4
  $region1: #{tpu_custom_call.1} parent=0
    #allocation2 [shape = 'u8[4096]{0}', space=vmem, size = 0x1000, scoped, tag = 'input window, operand 0, single buffered']
    #allocation3 [shape = 's32[1]{0}', space=sflag, size = 0x4, scoped, tag = 'scoped memory for tpu_custom_call.1']
    #allocation4 [shape = 's32[1]{0}', space=sflag, size = 0x4, scoped, tag = 'scoped memory for tpu_custom_call.1']
    #allocation5 [shape = 'u8[131072]{0}', space=vmem, size = 0x20000, scoped, tag = 'input window, operand 1, single buffered']
    #allocation6 [shape = 's32[1]{0}', space=sflag, size = 0x4, scoped, tag = 'scoped memory for tpu_custom_call.1']
    #allocation7 [shape = 'u8[2048]{0}', space=vmem, size = 0x800, scoped, tag = 'input window, operand 2, single buffered']
    #allocation8 [shape = 'u8[8192]{0}', space=vmem, size = 0x2000, scoped, tag = 'output window, operand 0, single buffered']
    %8 = vsyncpa [#allocation3], 0
    %9 = vsyncpa [#allocation6], 0
    %10 = vsyncpa [#allocation4], 0
    // Predicated region
    $region2: #{tpu_custom_call.1} parent=1 // pred_check
      _
    $region3: #{tpu_custom_call.1} parent=1 // pred_check_branch
      %12 = sbr.rel (0) target = $region5
    $region4: #{tpu_custom_call.1} parent=1 // pred_region
      %s14 = ssub.s32 128, 128
      %15 = vsyncadd [#allocation3], %s14
      %s16 = sshll.u32 [#allocation2], 4
      %s17 = int_to_ptr.vmem [resolvable:$true] %s16
      %22 = dma.hbm_to_vmem [thread:$0]  %s0, 128, %s17, [#allocation3], 64, 64, 4
    $region5: #{tpu_custom_call.1} parent=1 // pred_fallthru
      _
    // Predicated region
    $region6: #{tpu_custom_call.1} parent=1 // pred_check
      _
    $region7: #{tpu_custom_call.1} parent=1 // pred_check_branch
      %24 = sbr.rel (0) target = $region9
    $region8: #{tpu_custom_call.1} parent=1 // pred_region
      %s26 = ssub.s32 4096, 4096
      %27 = vsyncadd [#allocation6], %s26
      %s28 = sshll.u32 [#allocation5], 4
      %s29 = int_to_ptr.vmem [resolvable:$true] %s28
      %34 = dma.hbm_to_vmem [thread:$0]  %s1, 4096, %s29, [#allocation6], 64, 64, 4
    $region9: #{tpu_custom_call.1} parent=1 // pred_fallthru
      _
    // Predicated region
    $region10: #{tpu_custom_call.1} parent=1 // pred_check
      _
    $region11: #{tpu_custom_call.1} parent=1 // pred_check_branch
      %36 = sbr.rel (0) target = $region13
    $region12: #{tpu_custom_call.1} parent=1 // pred_region
      %s38 = ssub.s32 64, 64
      %39 = vsyncadd [#allocation6], %s38
      %s41 = sshll.u32 [#allocation7], 4
      %s42 = int_to_ptr.vmem [resolvable:$true] %s41
      %44 = dma.hbm_to_vmem [thread:$0]  %s2, 64, %s42, [#allocation6]
    $region13: #{tpu_custom_call.1} parent=1 // pred_fallthru
      _
    // Predicated region
    $region14: #{tpu_custom_call.1} parent=1 // pred_check
      _
    $region15: #{tpu_custom_call.1} parent=1 // pred_check_branch
      %46 = sbr.rel (0) target = $region17
    $region16: #{tpu_custom_call.1} parent=1 // pred_region
      %47 = dma.done [#allocation3], 128
    $region17: #{tpu_custom_call.1} parent=1 // pred_fallthru
      _
    // Predicated region
    $region18: #{tpu_custom_call.1} parent=1 // pred_check
      _
    $region19: #{tpu_custom_call.1} parent=1 // pred_check_branch
      %49 = sbr.rel (0) target = $region21
    $region20: #{tpu_custom_call.1} parent=1 // pred_region
      %50 = dma.done [#allocation6], 4096
    $region21: #{tpu_custom_call.1} parent=1 // pred_fallthru
      _
    // Predicated region
    $region22: #{tpu_custom_call.1} parent=1 // pred_check
      _
    $region23: #{tpu_custom_call.1} parent=1 // pred_check_branch
      %52 = sbr.rel (0) target = $region25
    $region24: #{tpu_custom_call.1} parent=1 // pred_region
      %53 = dma.done [#allocation6], 64
    $region25: #{tpu_custom_call.1} parent=1 // pred_fallthru
      _
    %v55 = vld [vmem:[#allocation2] sm:$0xf]
    %v56 = vld [vmem:[#allocation2 + $0x4] sm:$0xf]
    %v57 = vld [vmem:[#allocation5] sm:$0xf]
    %v58 = vld [vmem:[#allocation5 + $0x4] sm:$0xf]
    %v59 = vld [vmem:[#allocation5 + $0x8] sm:$0xf]
    %v60 = vld [vmem:[#allocation5 + $0xc] sm:$0xf]
    %v61 = vld [vmem:[#allocation5 + $0x10] sm:$0xf]
    %v62 = vld [vmem:[#allocation5 + $0x14] sm:$0xf]
    %v63 = vld [vmem:[#allocation5 + $0x18] sm:$0xf]
    %v64 = vld [vmem:[#allocation5 + $0x1c] sm:$0xf]
    %v65 = vld [vmem:[#allocation5 + $0x20] sm:$0xf]
    %v66 = vld [vmem:[#allocation5 + $0x24] sm:$0xf]
    %v67 = vld [vmem:[#allocation5 + $0x28] sm:$0xf]
    %v68 = vld [vmem:[#allocation5 + $0x2c] sm:$0xf]
    %v69 = vld [vmem:[#allocation5 + $0x30] sm:$0xf]
    %v70 = vld [vmem:[#allocation5 + $0x34] sm:$0xf]
    %v71 = vld [vmem:[#allocation5 + $0x38] sm:$0xf]
    %v72 = vld [vmem:[#allocation5 + $0x3c] sm:$0xf]
    %v73 = vld [vmem:[#allocation7] sm:$0x1]
    %v74 = vlaneseq
    %v75 = vshrl.u32 %v74, 7
    %v76 = vsub.s32 0, %v75
    %v77 = vrot.slane %v73, %v76
    %v80 = vunpack.c.l.b16 %v55
    %v81 = vunpack.c.l.b16 %v56
    %v82 = vpack.c.b16 %v81, %v80
    %v100 = vunpack.c.l.b16 %v57
    %v101 = vunpack.c.l.b16 %v58
    %v102 = vunpack.c.l.b16 %v59
    %v103 = vunpack.c.l.b16 %v60
    %v104 = vunpack.c.l.b16 %v61
    %v105 = vunpack.c.l.b16 %v62
    %v106 = vunpack.c.l.b16 %v63
    %v107 = vunpack.c.l.b16 %v64
    %v108 = vunpack.c.l.b16 %v65
    %v109 = vunpack.c.l.b16 %v66
    %v110 = vunpack.c.l.b16 %v67
    %v111 = vunpack.c.l.b16 %v68
    %v112 = vunpack.c.l.b16 %v69
    %v113 = vunpack.c.l.b16 %v70
    %v114 = vunpack.c.l.b16 %v71
    %v115 = vunpack.c.l.b16 %v72
    %v116 = vpack.c.b16 %v101, %v100
    %v117 = vpack.c.b16 %v103, %v102
    %v118 = vpack.c.b16 %v105, %v104
    %v119 = vpack.c.b16 %v107, %v106
    %v120 = vpack.c.b16 %v109, %v108
    %v121 = vpack.c.b16 %v111, %v110
    %v122 = vpack.c.b16 %v113, %v112
    %v123 = vpack.c.b16 %v115, %v114
    %132 = vmatprep.subr.bf16.mxu0 0
    %133 = vmatpush1.bf16.msra.mxu0 %v123
    %134 = vmatprep.subr.bf16.mxu0 0
    %135 = vmatpush1.bf16.msra.mxu0 %v122
    %136 = vmatprep.subr.bf16.mxu0 0
    %137 = vmatpush1.bf16.msra.mxu0 %v121
    %138 = vmatprep.subr.bf16.mxu0 0
    %139 = vmatpush1.bf16.msra.mxu0 %v120
    %140 = vmatprep.subr.bf16.mxu0 0
    %141 = vmatpush1.bf16.msra.mxu0 %v119
    %142 = vmatprep.subr.bf16.mxu0 0
    %143 = vmatpush1.bf16.msra.mxu0 %v118
    %144 = vmatprep.subr.bf16.mxu0 0
    %145 = vmatpush1.bf16.msra.mxu0 %v117
    %146 = vmatprep.subr.bf16.mxu0 0
    %147 = vmatpush1.bf16.msra.mxu0 %v116
    %148 = vmatprep.subr.bf16.mxu0 0
    %149 = vmatpush2.bf16.msra.mxu0 0
    %150 = vmatprep.subr.bf16.mxu0 0
    %151 = vmatpush2.bf16.msra.mxu0 0
    %152 = vmatprep.subr.bf16.mxu0 0
    %153 = vmatpush2.bf16.msra.mxu0 0
    %154 = vmatprep.subr.bf16.mxu0 0
    %155 = vmatpush2.bf16.msra.mxu0 0
    %156 = vmatprep.subr.bf16.mxu0 0
    %157 = vmatpush2.bf16.msra.mxu0 0
    %158 = vmatprep.subr.bf16.mxu0 0
    %159 = vmatpush2.bf16.msra.mxu0 0
    %160 = vmatprep.subr.bf16.mxu0 0
    %161 = vmatpush2.bf16.msra.mxu0 0
    %162 = vmatprep.subr.bf16.mxu0 0
    %163 = vmatpush2.bf16.msra.mxu0 0
    %164 = vmatprep.mubr.bf16.mxu0 0
    %165 = vmatmul.mubr.bf16.gmra.mxu0 %v82
    %v166 = vpop.f32.mrf.mxu0
    %v167 = vadd.f32 %v77, %v166
    %v168 = vpop.f32.mrf.mxu0
    %v169 = vpop.f32.mrf.mxu0
    %v170 = vadd.f32 %v77, %v169
    %v171 = vpop.f32.mrf.mxu0
    %172 = vdwg.mxu0
    %v173 = vmax.f32 %v167, 0.0
    %v174 = vmax.f32 %v170, 0.0
    %v175 = vpack.c.bf16 %v174, %v173
    %s176 = scalar_lea.vmem [#allocation5], 64
    %v177 = vld [vmem:[%s176] sm:$0xf]
    %v178 = vld [vmem:[%s176 + $0x4] sm:$0xf]
    %v179 = vld [vmem:[%s176 + $0x8] sm:$0xf]
    %v180 = vld [vmem:[%s176 + $0xc] sm:$0xf]
    %v181 = vld [vmem:[%s176 + $0x10] sm:$0xf]
    %v182 = vld [vmem:[%s176 + $0x14] sm:$0xf]
    %v183 = vld [vmem:[%s176 + $0x18] sm:$0xf]
    %v184 = vld [vmem:[%s176 + $0x1c] sm:$0xf]
    %v185 = vld [vmem:[%s176 + $0x20] sm:$0xf]
    %v186 = vld [vmem:[%s176 + $0x24] sm:$0xf]
    %v187 = vld [vmem:[%s176 + $0x28] sm:$0xf]
    %v188 = vld [vmem:[%s176 + $0x2c] sm:$0xf]
    %v189 = vld [vmem:[%s176 + $0x30] sm:$0xf]
    %v190 = vld [vmem:[%s176 + $0x34] sm:$0xf]
    %v191 = vld [vmem:[%s176 + $0x38] sm:$0xf]
    %v192 = vld [vmem:[%s176 + $0x3c] sm:$0xf]
    %v193 = vld [vmem:[#allocation7 + $0x1] sm:$0x1]
    %v194 = vlaneseq
    %v195 = vshrl.u32 %v194, 7
    %v196 = vsub.s32 0, %v195
    %v197 = vrot.slane %v193, %v196
    %v214 = vunpack.c.l.b16 %v177
    %v215 = vunpack.c.l.b16 %v178
    %v216 = vunpack.c.l.b16 %v179
    %v217 = vunpack.c.l.b16 %v180
    %v218 = vunpack.c.l.b16 %v181
    %v219 = vunpack.c.l.b16 %v182
    %v220 = vunpack.c.l.b16 %v183
    %v221 = vunpack.c.l.b16 %v184
    %v222 = vunpack.c.l.b16 %v185
    %v223 = vunpack.c.l.b16 %v186
    %v224 = vunpack.c.l.b16 %v187
    %v225 = vunpack.c.l.b16 %v188
    %v226 = vunpack.c.l.b16 %v189
    %v227 = vunpack.c.l.b16 %v190
    %v228 = vunpack.c.l.b16 %v191
    %v229 = vunpack.c.l.b16 %v192
    %v230 = vpack.c.b16 %v215, %v214
    %v231 = vpack.c.b16 %v217, %v216
    %v232 = vpack.c.b16 %v219, %v218
    %v233 = vpack.c.b16 %v221, %v220
    %v234 = vpack.c.b16 %v223, %v222
    %v235 = vpack.c.b16 %v225, %v224
    %v236 = vpack.c.b16 %v227, %v226
    %v237 = vpack.c.b16 %v229, %v228
    %246 = vmatprep.subr.bf16.mxu0 0
    %247 = vmatpush1.bf16.msra.mxu0 %v237
    %248 = vmatprep.subr.bf16.mxu0 0
    %249 = vmatpush1.bf16.msra.mxu0 %v236
    %250 = vmatprep.subr.bf16.mxu0 0
    %251 = vmatpush1.bf16.msra.mxu0 %v235
    %252 = vmatprep.subr.bf16.mxu0 0
    %253 = vmatpush1.bf16.msra.mxu0 %v234
    %254 = vmatprep.subr.bf16.mxu0 0
    %255 = vmatpush1.bf16.msra.mxu0 %v233
    %256 = vmatprep.subr.bf16.mxu0 0
    %257 = vmatpush1.bf16.msra.mxu0 %v232
    %258 = vmatprep.subr.bf16.mxu0 0
    %259 = vmatpush1.bf16.msra.mxu0 %v231
    %260 = vmatprep.subr.bf16.mxu0 0
    %261 = vmatpush1.bf16.msra.mxu0 %v230
    %262 = vmatprep.subr.bf16.mxu0 0
    %263 = vmatpush2.bf16.msra.mxu0 0
    %264 = vmatprep.subr.bf16.mxu0 0
    %265 = vmatpush2.bf16.msra.mxu0 0
    %266 = vmatprep.subr.bf16.mxu0 0
    %267 = vmatpush2.bf16.msra.mxu0 0
    %268 = vmatprep.subr.bf16.mxu0 0
    %269 = vmatpush2.bf16.msra.mxu0 0
    %270 = vmatprep.subr.bf16.mxu0 0
    %271 = vmatpush2.bf16.msra.mxu0 0
    %272 = vmatprep.subr.bf16.mxu0 0
    %273 = vmatpush2.bf16.msra.mxu0 0
    %274 = vmatprep.subr.bf16.mxu0 0
    %275 = vmatpush2.bf16.msra.mxu0 0
    %276 = vmatprep.subr.bf16.mxu0 0
    %277 = vmatpush2.bf16.msra.mxu0 0
    %278 = vmatprep.mubr.bf16.mxu0 0
    %279 = vmatmul.mubr.bf16.gmra.mxu0 %v175
    %v280 = vpop.f32.mrf.mxu0
    %v281 = vadd.f32 %v197, %v280
    %v282 = vpop.f32.mrf.mxu0
    %v283 = vpop.f32.mrf.mxu0
    %v284 = vadd.f32 %v197, %v283
    %v285 = vpop.f32.mrf.mxu0
    %286 = vdwg.mxu0
    %v287 = vmax.f32 %v281, 0.0
    %v288 = vmax.f32 %v284, 0.0
    %v289 = vpack.c.bf16 %v288, %v287
    %s290 = scalar_lea.vmem [#allocation5], 128
    %v291 = vld [vmem:[%s290] sm:$0xf]
    %v292 = vld [vmem:[%s290 + $0x4] sm:$0xf]
    %v293 = vld [vmem:[%s290 + $0x8] sm:$0xf]
    %v294 = vld [vmem:[%s290 + $0xc] sm:$0xf]
    %v295 = vld [vmem:[%s290 + $0x10] sm:$0xf]
    %v296 = vld [vmem:[%s290 + $0x14] sm:$0xf]
    %v297 = vld [vmem:[%s290 + $0x18] sm:$0xf]
    %v298 = vld [vmem:[%s290 + $0x1c] sm:$0xf]
    %v299 = vld [vmem:[%s290 + $0x20] sm:$0xf]
    %v300 = vld [vmem:[%s290 + $0x24] sm:$0xf]
    %v301 = vld [vmem:[%s290 + $0x28] sm:$0xf]
    %v302 = vld [vmem:[%s290 + $0x2c] sm:$0xf]
    %v303 = vld [vmem:[%s290 + $0x30] sm:$0xf]
    %v304 = vld [vmem:[%s290 + $0x34] sm:$0xf]
    %v305 = vld [vmem:[%s290 + $0x38] sm:$0xf]
    %v306 = vld [vmem:[%s290 + $0x3c] sm:$0xf]
    %v307 = vld [vmem:[#allocation7 + $0x2] sm:$0x1]
    %v308 = vlaneseq
    %v309 = vshrl.u32 %v308, 7
    %v310 = vsub.s32 0, %v309
    %v311 = vrot.slane %v307, %v310
    %v328 = vunpack.c.l.b16 %v291
    %v329 = vunpack.c.l.b16 %v292
    %v330 = vunpack.c.l.b16 %v293
    %v331 = vunpack.c.l.b16 %v294
    %v332 = vunpack.c.l.b16 %v295
    %v333 = vunpack.c.l.b16 %v296
    %v334 = vunpack.c.l.b16 %v297
    %v335 = vunpack.c.l.b16 %v298
    %v336 = vunpack.c.l.b16 %v299
    %v337 = vunpack.c.l.b16 %v300
    %v338 = vunpack.c.l.b16 %v301
    %v339 = vunpack.c.l.b16 %v302
    %v340 = vunpack.c.l.b16 %v303
    %v341 = vunpack.c.l.b16 %v304
    %v342 = vunpack.c.l.b16 %v305
    %v343 = vunpack.c.l.b16 %v306
    %v344 = vpack.c.b16 %v329, %v328
    %v345 = vpack.c.b16 %v331, %v330
    %v346 = vpack.c.b16 %v333, %v332
    %v347 = vpack.c.b16 %v335, %v334
    %v348 = vpack.c.b16 %v337, %v336
    %v349 = vpack.c.b16 %v339, %v338
    %v350 = vpack.c.b16 %v341, %v340
    %v351 = vpack.c.b16 %v343, %v342
    %360 = vmatprep.subr.bf16.mxu0 0
    %361 = vmatpush1.bf16.msra.mxu0 %v351
    %362 = vmatprep.subr.bf16.mxu0 0
    %363 = vmatpush1.bf16.msra.mxu0 %v350
    %364 = vmatprep.subr.bf16.mxu0 0
    %365 = vmatpush1.bf16.msra.mxu0 %v349
    %366 = vmatprep.subr.bf16.mxu0 0
    %367 = vmatpush1.bf16.msra.mxu0 %v348
    %368 = vmatprep.subr.bf16.mxu0 0
    %369 = vmatpush1.bf16.msra.mxu0 %v347
    %370 = vmatprep.subr.bf16.mxu0 0
    %371 = vmatpush1.bf16.msra.mxu0 %v346
    %372 = vmatprep.subr.bf16.mxu0 0
    %373 = vmatpush1.bf16.msra.mxu0 %v345
    %374 = vmatprep.subr.bf16.mxu0 0
    %375 = vmatpush1.bf16.msra.mxu0 %v344
    %376 = vmatprep.subr.bf16.mxu0 0
    %377 = vmatpush2.bf16.msra.mxu0 0
    %378 = vmatprep.subr.bf16.mxu0 0
    %379 = vmatpush2.bf16.msra.mxu0 0
    %380 = vmatprep.subr.bf16.mxu0 0
    %381 = vmatpush2.bf16.msra.mxu0 0
    %382 = vmatprep.subr.bf16.mxu0 0
    %383 = vmatpush2.bf16.msra.mxu0 0
    %384 = vmatprep.subr.bf16.mxu0 0
    %385 = vmatpush2.bf16.msra.mxu0 0
    %386 = vmatprep.subr.bf16.mxu0 0
    %387 = vmatpush2.bf16.msra.mxu0 0
    %388 = vmatprep.subr.bf16.mxu0 0
    %389 = vmatpush2.bf16.msra.mxu0 0
    %390 = vmatprep.subr.bf16.mxu0 0
    %391 = vmatpush2.bf16.msra.mxu0 0
    %392 = vmatprep.mubr.bf16.mxu0 0
    %393 = vmatmul.mubr.bf16.gmra.mxu0 %v289
    %v394 = vpop.f32.mrf.mxu0
    %v395 = vadd.f32 %v311, %v394
    %v396 = vpop.f32.mrf.mxu0
    %v397 = vpop.f32.mrf.mxu0
    %v398 = vadd.f32 %v311, %v397
    %v399 = vpop.f32.mrf.mxu0
    %400 = vdwg.mxu0
    %v401 = vmax.f32 %v395, 0.0
    %v402 = vmax.f32 %v398, 0.0
    %v403 = vpack.c.bf16 %v402, %v401
    %s404 = scalar_lea.vmem [#allocation5], 192
    %v405 = vld [vmem:[%s404] sm:$0xf]
    %v406 = vld [vmem:[%s404 + $0x4] sm:$0xf]
    %v407 = vld [vmem:[%s404 + $0x8] sm:$0xf]
    %v408 = vld [vmem:[%s404 + $0xc] sm:$0xf]
    %v409 = vld [vmem:[%s404 + $0x10] sm:$0xf]
    %v410 = vld [vmem:[%s404 + $0x14] sm:$0xf]
    %v411 = vld [vmem:[%s404 + $0x18] sm:$0xf]
    %v412 = vld [vmem:[%s404 + $0x1c] sm:$0xf]
    %v413 = vld [vmem:[%s404 + $0x20] sm:$0xf]
    %v414 = vld [vmem:[%s404 + $0x24] sm:$0xf]
    %v415 = vld [vmem:[%s404 + $0x28] sm:$0xf]
    %v416 = vld [vmem:[%s404 + $0x2c] sm:$0xf]
    %v417 = vld [vmem:[%s404 + $0x30] sm:$0xf]
    %v418 = vld [vmem:[%s404 + $0x34] sm:$0xf]
    %v419 = vld [vmem:[%s404 + $0x38] sm:$0xf]
    %v420 = vld [vmem:[%s404 + $0x3c] sm:$0xf]
    %v421 = vld [vmem:[#allocation7 + $0x3] sm:$0x1]
    %v422 = vlaneseq
    %v423 = vshrl.u32 %v422, 7
    %v424 = vsub.s32 0, %v423
    %v425 = vrot.slane %v421, %v424
    %v442 = vunpack.c.l.b16 %v405
    %v443 = vunpack.c.l.b16 %v406
    %v444 = vunpack.c.l.b16 %v407
    %v445 = vunpack.c.l.b16 %v408
    %v446 = vunpack.c.l.b16 %v409
    %v447 = vunpack.c.l.b16 %v410
    %v448 = vunpack.c.l.b16 %v411
    %v449 = vunpack.c.l.b16 %v412
    %v450 = vunpack.c.l.b16 %v413
    %v451 = vunpack.c.l.b16 %v414
    %v452 = vunpack.c.l.b16 %v415
    %v453 = vunpack.c.l.b16 %v416
    %v454 = vunpack.c.l.b16 %v417
    %v455 = vunpack.c.l.b16 %v418
    %v456 = vunpack.c.l.b16 %v419
    %v457 = vunpack.c.l.b16 %v420
    %v458 = vpack.c.b16 %v443, %v442
    %v459 = vpack.c.b16 %v445, %v444
    %v460 = vpack.c.b16 %v447, %v446
    %v461 = vpack.c.b16 %v449, %v448
    %v462 = vpack.c.b16 %v451, %v450
    %v463 = vpack.c.b16 %v453, %v452
    %v464 = vpack.c.b16 %v455, %v454
    %v465 = vpack.c.b16 %v457, %v456
    %474 = vmatprep.subr.bf16.mxu0 0
    %475 = vmatpush1.bf16.msra.mxu0 %v465
    %476 = vmatprep.subr.bf16.mxu0 0
    %477 = vmatpush1.bf16.msra.mxu0 %v464
    %478 = vmatprep.subr.bf16.mxu0 0
    %479 = vmatpush1.bf16.msra.mxu0 %v463
    %480 = vmatprep.subr.bf16.mxu0 0
    %481 = vmatpush1.bf16.msra.mxu0 %v462
    %482 = vmatprep.subr.bf16.mxu0 0
    %483 = vmatpush1.bf16.msra.mxu0 %v461
    %484 = vmatprep.subr.bf16.mxu0 0
    %485 = vmatpush1.bf16.msra.mxu0 %v460
    %486 = vmatprep.subr.bf16.mxu0 0
    %487 = vmatpush1.bf16.msra.mxu0 %v459
    %488 = vmatprep.subr.bf16.mxu0 0
    %489 = vmatpush1.bf16.msra.mxu0 %v458
    %490 = vmatprep.subr.bf16.mxu0 0
    %491 = vmatpush2.bf16.msra.mxu0 0
    %492 = vmatprep.subr.bf16.mxu0 0
    %493 = vmatpush2.bf16.msra.mxu0 0
    %494 = vmatprep.subr.bf16.mxu0 0
    %495 = vmatpush2.bf16.msra.mxu0 0
    %496 = vmatprep.subr.bf16.mxu0 0
    %497 = vmatpush2.bf16.msra.mxu0 0
    %498 = vmatprep.subr.bf16.mxu0 0
    %499 = vmatpush2.bf16.msra.mxu0 0
    %500 = vmatprep.subr.bf16.mxu0 0
    %501 = vmatpush2.bf16.msra.mxu0 0
    %502 = vmatprep.subr.bf16.mxu0 0
    %503 = vmatpush2.bf16.msra.mxu0 0
    %504 = vmatprep.subr.bf16.mxu0 0
    %505 = vmatpush2.bf16.msra.mxu0 0
    %506 = vmatprep.mubr.bf16.mxu0 0
    %507 = vmatmul.mubr.bf16.gmra.mxu0 %v403
    %v508 = vpop.f32.mrf.mxu0
    %v509 = vadd.f32 %v425, %v508
    %v510 = vpop.f32.mrf.mxu0
    %v511 = vpop.f32.mrf.mxu0
    %v512 = vadd.f32 %v425, %v511
    %v513 = vpop.f32.mrf.mxu0
    %514 = vdwg.mxu0
    %515 = vst [vmem:[#allocation8] sm:$0xff] %v509
    %516 = vst [vmem:[#allocation8 + $0x8] sm:$0xff] %v512
    // Predicated region
    $region26: #{tpu_custom_call.1} parent=1 // pred_check
      _
    $region27: #{tpu_custom_call.1} parent=1 // pred_check_branch
      %518 = sbr.rel (0) target = $region29
    $region28: #{tpu_custom_call.1} parent=1 // pred_region
      %s520 = ssub.s32 256, 256
      %521 = vsyncadd [#allocation4], %s520
      %s522 = sshll.u32 [#allocation8], 4
      %s523 = int_to_ptr.vmem [resolvable:$true] %s522
      %528 = dma.vmem_to_hbm [thread:$0]  %s523, 256, %s3, [#allocation4], 128, 128, 8
    $region29: #{tpu_custom_call.1} parent=1 // pred_fallthru
      _
    // Predicated region
    $region30: #{tpu_custom_call.1} parent=1 // pred_check
      _
    $region31: #{tpu_custom_call.1} parent=1 // pred_check_branch
      %530 = sbr.rel (0) target = $region33
    $region32: #{tpu_custom_call.1} parent=1 // pred_region
      %531 = dma.done [#allocation4], 256
    $region33: #{tpu_custom_call.1} parent=1 // pred_fallthru
      _
    %532 = vsyncpa [#allocation3], 1
    %533 = vsyncpa [#allocation6], 1
    %534 = vsyncpa [#allocation4], 1

</llo_original>
